<compile_context>
chip_gen: v7x
topology: tpu7x:2x2x1
jax: 0.10.0
libtpu: 0.0.40
codegen_flags: <defaults>
</compile_context>

<pallas_src>
import jax
import jax.numpy as jnp
from jax.experimental import pallas as pl
from jax.experimental.pallas import tpu as pltpu


LANE = 128
HALF = LANE // 2          # eps / log_sigma live in the upper half-vreg lanes
_N_LAYERS = 6             # e0, e1, fused(mu|log_sigma), d0, d1, gen


# --------------------------------------------------------------------------- #
# Parameter packing (host side, once — weights are constants across calls)
# --------------------------------------------------------------------------- #
def pack_params(params):
    """Pack all Linear layers into ONE [6*128 + 8, 128] f32 blob.

    Per-layer weight blocks are full 128x128 tiles (weights stored [in, out],
    pre-transposed vs PyTorch, zero padded), stacked along rows in order
    (e0, e1, fused mu|log_sigma, d0, d1, gen).  The fused head places mu at
    columns 0:n_z and log_sigma at columns 64:64+n_z.  An [8, 128] bias block
    (one row per layer, zero padded, same column placement) is appended so the
    kernel takes a single packed parameter ref (one DMA).
    """
    def wblk(*pieces):                              # pieces: (w[in,out], col_off)
        blk = jnp.zeros((LANE, LANE), jnp.float32)
        for w, coff in pieces:
            din, dout = w.shape
            assert din <= LANE and coff + dout <= LANE
            blk = blk.at[:din, coff:coff + dout].set(w)
        return blk

    wblocks = [
        wblk((params["w_e0"], 0)),
        wblk((params["w_e1"], 0)),
        wblk((params["w_mu"], 0), (params["w_ls"], HALF)),   # fused latent heads
        wblk((params["w_d0"], 0)),
        wblk((params["w_d1"], 0)),
        wblk((params["w_g"], 0)),
    ]

    bias = jnp.zeros((8, LANE), jnp.float32)
    brows = [
        [(params["b_e0"], 0)],
        [(params["b_e1"], 0)],
        [(params["b_mu"], 0), (params["b_ls"], HALF)],
        [(params["b_d0"], 0)],
        [(params["b_d1"], 0)],
        [(params["b_g"], 0)],
    ]
    for i, pieces in enumerate(brows):
        for b, coff in pieces:
            bias = bias.at[i, coff:coff + b.shape[1]].set(b[0])

    return jnp.concatenate(wblocks + [bias], axis=0)     # [6*128 + 8, 128]


# --------------------------------------------------------------------------- #
# Kernel
# --------------------------------------------------------------------------- #
def _make_kernel(in_dim, n_z):
    bias_row0 = _N_LAYERS * LANE

    def kernel(xe_ref, p_ref, out_ref):
        xe = xe_ref[...]                                   # [B,128]: x | 0 | eps | 0
        batch = xe.shape[0]

        def layer(a, idx):
            # Full 128x128 weight tile (static, tile-aligned slice) and one bias
            # row — [B,128] @ [128,128] is the MXU-native shape; zero padding
            # keeps the extra lanes mathematically inert.
            w = p_ref[idx * LANE:(idx + 1) * LANE, :]
            b = p_ref[bias_row0 + idx:bias_row0 + idx + 1, :]
            return jnp.dot(a, w, preferred_element_type=jnp.float32) + b

        relu = lambda t: jnp.maximum(t, 0.0)

        # encoder: Linear -> ReLU -> Linear -> ReLU  (eps lanes hit zero weight rows)
        h = relu(layer(xe, 0))
        h = relu(layer(h, 1))

        # fused latent heads: mu -> lanes 0:n_z, log_sigma -> lanes 64:64+n_z
        lat = layer(h, 2)

        # Half-vreg XLU rolls (shift of 64 is direction-agnostic mod 128) align
        # log_sigma and eps with the mu lanes — no lane-narrow slices on the chain.
        ls_aligned = pltpu.roll(lat, HALF, axis=1)         # lanes 0:n_z = log_sigma
        eps_aligned = pltpu.roll(xe, HALF, axis=1)         # lanes 0:n_z = eps

        # reparameterize exactly as the reference: sqrt(clamp(exp(log_var), 1e-10))
        std = jnp.sqrt(jnp.maximum(jnp.exp(ls_aligned), 1e-10))
        z = lat + eps_aligned * std                        # lanes 0:n_z valid; rest inert

        # decoder: Linear -> ReLU -> Linear -> ReLU   (d0 weight rows n_z: are zero)
        d = relu(layer(z, 3))
        d = relu(layer(d, 4))

        # generator head + softmax over dim=0 (the batch axis); exact divide.
        logits = layer(d, 5)
        e = jnp.exp(logits - jnp.max(logits, axis=0, keepdims=True))
        x_recon = e / jnp.sum(e, axis=0, keepdims=True)

        # pack the four outputs into one lane-dense [B,128] slab -> single store
        pad = LANE - (in_dim + 3 * n_z)
        out_ref[...] = jnp.concatenate(
            [x_recon[:, :in_dim],
             lat[:, :n_z],                                 # z_mean
             ls_aligned[:, :n_z],                          # z_log_sigma_sq
             z[:, :n_z],
             jnp.zeros((batch, pad), jnp.float32)],
            axis=-1)

    return kernel


# --------------------------------------------------------------------------- #
# Wrapper
# --------------------------------------------------------------------------- #
def inference_generation_forward(x, eps, packed_params):
    """x: [B, in_dim] f32; eps: [B, n_z] f32; packed_params from pack_params."""
    B, in_dim = x.shape
    n_z = eps.shape[1]
    # TODO(synk): layouts assume in_dim, n_z <= 64 and in_dim + 3*n_z <= 128;
    # larger widths need multi-tile packing.
    assert in_dim <= HALF and n_z <= HALF and in_dim + 3 * n_z <= LANE

    # Pack x and eps into ONE lane-dense [B, 128] slab (single input DMA):
    # x in lanes 0:in_dim, eps in lanes 64:64+n_z.
    xe = jnp.zeros((B, LANE), jnp.float32)
    xe = xe.at[:, :in_dim].set(x.astype(jnp.float32))
    xe = xe.at[:, HALF:HALF + n_z].set(eps.astype(jnp.float32))

    vmem = pl.BlockSpec(memory_space=pltpu.MemorySpace.VMEM)
    out = pl.pallas_call(
        _make_kernel(in_dim, n_z),
        out_shape=jax.ShapeDtypeStruct((B, LANE), jnp.float32),
        in_specs=[vmem, vmem],
        out_specs=vmem,
    )(xe, packed_params)

    # Callers that can consume the slab directly should do so to skip these
    # four tiny slice ops; we return the module's four tensors for parity.
    x_recon = out[:, :in_dim]
    z_mean = out[:, in_dim:in_dim + n_z]
    z_log_sigma_sq = out[:, in_dim + n_z:in_dim + 2 * n_z]
    z = out[:, in_dim + 2 * n_z:in_dim + 3 * n_z]
    return x_recon, z_mean, z_log_sigma_sq, z


# --------------------------------------------------------------------------- #
# Synthetic init + pure-JAX reference
# --------------------------------------------------------------------------- #
def init_params(key, in_dim, hidden_dim, n_z):
    """Deterministic synthetic init.  Weights stored as [in, out] (transposed
    relative to PyTorch's [out, in]); biases as [1, out]."""
    h0, h1 = hidden_dim
    dims = {
        "e0": (in_dim, h0), "e1": (h0, h1),
        "mu": (h1, n_z), "ls": (h1, n_z),
        "d0": (n_z, h1), "d1": (h1, h0),
        "g": (h0, in_dim),
    }
    params = {}
    keys = jax.random.split(key, 2 * len(dims))
    for i, (name, (din, dout)) in enumerate(dims.items()):
        kw, kb = keys[2 * i], keys[2 * i + 1]
        scale = 1.0 / jnp.sqrt(din)
        params[f"w_{name}"] = jax.random.uniform(kw, (din, dout), jnp.float32, -scale, scale)
        params[f"b_{name}"] = jax.random.uniform(kb, (1, dout), jnp.float32, -scale, scale)
    return params


def reference_forward(x, eps, p):
    """Plain-JAX reference mirroring the PyTorch forward (ReLU activations)."""
    h = jnp.maximum(x @ p["w_e0"] + p["b_e0"], 0.0)
    h = jnp.maximum(h @ p["w_e1"] + p["b_e1"], 0.0)
    mu = h @ p["w_mu"] + p["b_mu"]
    logv = h @ p["w_ls"] + p["b_ls"]
    std = jnp.sqrt(jnp.maximum(jnp.exp(logv), 1e-10))
    z = mu + eps * std
    d = jnp.maximum(z @ p["w_d0"] + p["b_d0"], 0.0)
    d = jnp.maximum(d @ p["w_d1"] + p["b_d1"], 0.0)
    logits = d @ p["w_g"] + p["b_g"]
    xr = jax.nn.softmax(logits, axis=0)
    return xr, mu, logv, z


if __name__ == "__main__":
    B, in_dim, hidden_dim, n_z = 8, 32, (64, 32), 16

    key = jax.random.PRNGKey(0)
    k_x, k_eps, k_p = jax.random.split(key, 3)
    x = jax.random.normal(k_x, (B, in_dim), jnp.float32)
    eps = jax.random.normal(k_eps, (B, n_z), jnp.float32)
    params = init_params(k_p, in_dim, hidden_dim, n_z)
    packed = pack_params(params)

    outs = inference_generation_forward(x, eps, packed)
    outs = jax.block_until_ready(outs)

    refs = reference_forward(x, eps, params)
    names = ("x_recon", "z_mean", "z_log_sigma_sq", "z")
    for name, o, r in zip(names, outs, refs):
        assert o.shape == r.shape, (name, o.shape, r.shape)
        err = float(jnp.max(jnp.abs(o - r)))
        assert err < 1e-4, f"{name}: max abs err {err} exceeds tol 1e-4"

    print("KERNEL_OK")
</pallas_src>

<mosaic_0001>
module attributes {stable_mosaic.version = 11 : i64} {
  func.func @kernel(%arg0: memref<8x128xf32, #tpu.memory_space<vmem>>, %arg1: memref<776x128xf32, #tpu.memory_space<vmem>>, %arg2: memref<8x128xf32, #tpu.memory_space<vmem>>) attributes {dimension_semantics = [], scalar_prefetch = 0 : i64, scratch_operands = 0 : i64, tpu.core_type = #tpu.core_type<tc>} {
    %c0 = arith.constant 0 : index
    %c0_0 = arith.constant 0 : index
    %0 = vector.load %arg0[%c0, %c0_0] : memref<8x128xf32, #tpu.memory_space<vmem>>, vector<8x128xf32>
    %c0_1 = arith.constant 0 : index
    %c0_2 = arith.constant 0 : index
    %1 = vector.load %arg1[%c0_1, %c0_2] : memref<776x128xf32, #tpu.memory_space<vmem>>, vector<128x128xf32>
    %c768 = arith.constant 768 : index
    %c0_3 = arith.constant 0 : index
    %2 = vector.load %arg1[%c768, %c0_3] : memref<776x128xf32, #tpu.memory_space<vmem>>, vector<1x128xf32>
    %cst = arith.constant dense<0.000000e+00> : vector<8x128xf32>
    %3 = tpu.matmul %0, %1, %cst {dimension_numbers = #tpu.dot_dimension_numbers<[1], [0], [0], [1], [0, 0, 1, 1], [], []>} : vector<8x128xf32>, vector<128x128xf32>, vector<8x128xf32> -> vector<8x128xf32>
    %4 = vector.broadcast %2 : vector<1x128xf32> to vector<8x128xf32>
    %5 = arith.addf %3, %4 : vector<8x128xf32>
    %cst_4 = arith.constant 0.000000e+00 : f32
    %6 = vector.broadcast %cst_4 : f32 to vector<8x128xf32>
    %7 = arith.maximumf %5, %6 : vector<8x128xf32>
    %c128 = arith.constant 128 : index
    %c0_5 = arith.constant 0 : index
    %8 = vector.load %arg1[%c128, %c0_5] : memref<776x128xf32, #tpu.memory_space<vmem>>, vector<128x128xf32>
    %c769 = arith.constant 769 : index
    %c0_6 = arith.constant 0 : index
    %9 = vector.load %arg1[%c769, %c0_6] : memref<776x128xf32, #tpu.memory_space<vmem>>, vector<1x128xf32>
    %cst_7 = arith.constant dense<0.000000e+00> : vector<8x128xf32>
    %10 = tpu.matmul %7, %8, %cst_7 {dimension_numbers = #tpu.dot_dimension_numbers<[1], [0], [0], [1], [0, 0, 1, 1], [], []>} : vector<8x128xf32>, vector<128x128xf32>, vector<8x128xf32> -> vector<8x128xf32>
    %11 = vector.broadcast %9 : vector<1x128xf32> to vector<8x128xf32>
    %12 = arith.addf %10, %11 : vector<8x128xf32>
    %cst_8 = arith.constant 0.000000e+00 : f32
    %13 = vector.broadcast %cst_8 : f32 to vector<8x128xf32>
    %14 = arith.maximumf %12, %13 : vector<8x128xf32>
    %c256 = arith.constant 256 : index
    %c0_9 = arith.constant 0 : index
    %15 = vector.load %arg1[%c256, %c0_9] : memref<776x128xf32, #tpu.memory_space<vmem>>, vector<128x128xf32>
    %c770 = arith.constant 770 : index
    %c0_10 = arith.constant 0 : index
    %16 = vector.load %arg1[%c770, %c0_10] : memref<776x128xf32, #tpu.memory_space<vmem>>, vector<1x128xf32>
    %cst_11 = arith.constant dense<0.000000e+00> : vector<8x128xf32>
    %17 = tpu.matmul %14, %15, %cst_11 {dimension_numbers = #tpu.dot_dimension_numbers<[1], [0], [0], [1], [0, 0, 1, 1], [], []>} : vector<8x128xf32>, vector<128x128xf32>, vector<8x128xf32> -> vector<8x128xf32>
    %18 = vector.broadcast %16 : vector<1x128xf32> to vector<8x128xf32>
    %19 = arith.addf %17, %18 : vector<8x128xf32>
    %c64_i32 = arith.constant 64 : i32
    %20 = tpu.dynamic_rotate %19 by %c64_i32 dim 1 : vector<8x128xf32>, i32 -> vector<8x128xf32>
    %c64_i32_12 = arith.constant 64 : i32
    %21 = tpu.dynamic_rotate %0 by %c64_i32_12 dim 1 : vector<8x128xf32>, i32 -> vector<8x128xf32>
    %22 = math.exp %20 : vector<8x128xf32>
    %cst_13 = arith.constant 1.000000e-10 : f32
    %23 = vector.broadcast %cst_13 : f32 to vector<8x128xf32>
    %24 = arith.maximumf %22, %23 : vector<8x128xf32>
    %25 = math.sqrt %24 : vector<8x128xf32>
    %26 = arith.mulf %21, %25 : vector<8x128xf32>
    %27 = arith.addf %19, %26 : vector<8x128xf32>
    %c384 = arith.constant 384 : index
    %c0_14 = arith.constant 0 : index
    %28 = vector.load %arg1[%c384, %c0_14] : memref<776x128xf32, #tpu.memory_space<vmem>>, vector<128x128xf32>
    %c771 = arith.constant 771 : index
    %c0_15 = arith.constant 0 : index
    %29 = vector.load %arg1[%c771, %c0_15] : memref<776x128xf32, #tpu.memory_space<vmem>>, vector<1x128xf32>
    %cst_16 = arith.constant dense<0.000000e+00> : vector<8x128xf32>
    %30 = tpu.matmul %27, %28, %cst_16 {dimension_numbers = #tpu.dot_dimension_numbers<[1], [0], [0], [1], [0, 0, 1, 1], [], []>} : vector<8x128xf32>, vector<128x128xf32>, vector<8x128xf32> -> vector<8x128xf32>
    %31 = vector.broadcast %29 : vector<1x128xf32> to vector<8x128xf32>
    %32 = arith.addf %30, %31 : vector<8x128xf32>
    %cst_17 = arith.constant 0.000000e+00 : f32
    %33 = vector.broadcast %cst_17 : f32 to vector<8x128xf32>
    %34 = arith.maximumf %32, %33 : vector<8x128xf32>
    %c512 = arith.constant 512 : index
    %c0_18 = arith.constant 0 : index
    %35 = vector.load %arg1[%c512, %c0_18] : memref<776x128xf32, #tpu.memory_space<vmem>>, vector<128x128xf32>
    %c772 = arith.constant 772 : index
    %c0_19 = arith.constant 0 : index
    %36 = vector.load %arg1[%c772, %c0_19] : memref<776x128xf32, #tpu.memory_space<vmem>>, vector<1x128xf32>
    %cst_20 = arith.constant dense<0.000000e+00> : vector<8x128xf32>
    %37 = tpu.matmul %34, %35, %cst_20 {dimension_numbers = #tpu.dot_dimension_numbers<[1], [0], [0], [1], [0, 0, 1, 1], [], []>} : vector<8x128xf32>, vector<128x128xf32>, vector<8x128xf32> -> vector<8x128xf32>
    %38 = vector.broadcast %36 : vector<1x128xf32> to vector<8x128xf32>
    %39 = arith.addf %37, %38 : vector<8x128xf32>
    %cst_21 = arith.constant 0.000000e+00 : f32
    %40 = vector.broadcast %cst_21 : f32 to vector<8x128xf32>
    %41 = arith.maximumf %39, %40 : vector<8x128xf32>
    %c640 = arith.constant 640 : index
    %c0_22 = arith.constant 0 : index
    %42 = vector.load %arg1[%c640, %c0_22] : memref<776x128xf32, #tpu.memory_space<vmem>>, vector<128x128xf32>
    %c773 = arith.constant 773 : index
    %c0_23 = arith.constant 0 : index
    %43 = vector.load %arg1[%c773, %c0_23] : memref<776x128xf32, #tpu.memory_space<vmem>>, vector<1x128xf32>
    %cst_24 = arith.constant dense<0.000000e+00> : vector<8x128xf32>
    %44 = tpu.matmul %41, %42, %cst_24 {dimension_numbers = #tpu.dot_dimension_numbers<[1], [0], [0], [1], [0, 0, 1, 1], [], []>} : vector<8x128xf32>, vector<128x128xf32>, vector<8x128xf32> -> vector<8x128xf32>
    %45 = vector.broadcast %43 : vector<1x128xf32> to vector<8x128xf32>
    %46 = arith.addf %44, %45 : vector<8x128xf32>
    %cst_25 = arith.constant dense<0xFF800000> : vector<128xf32>
    %47 = vector.multi_reduction <maximumf>, %46, %cst_25 [0] : vector<8x128xf32> to vector<128xf32>
    %48 = vector.shape_cast %47 : vector<128xf32> to vector<1x128xf32>
    %49 = vector.broadcast %48 : vector<1x128xf32> to vector<8x128xf32>
    %50 = arith.subf %46, %49 : vector<8x128xf32>
    %51 = math.exp %50 : vector<8x128xf32>
    %cst_26 = arith.constant dense<0.000000e+00> : vector<128xf32>
    %52 = vector.multi_reduction <add>, %51, %cst_26 [0] : vector<8x128xf32> to vector<128xf32>
    %53 = vector.shape_cast %52 : vector<128xf32> to vector<1x128xf32>
    %54 = vector.broadcast %53 : vector<1x128xf32> to vector<8x128xf32>
    %55 = arith.divf %51, %54 : vector<8x128xf32>
    %56 = vector.extract_strided_slice %55 {offsets = [0, 0], sizes = [8, 32], strides = [1, 1]} : vector<8x128xf32> to vector<8x32xf32>
    %57 = vector.extract_strided_slice %19 {offsets = [0, 0], sizes = [8, 16], strides = [1, 1]} : vector<8x128xf32> to vector<8x16xf32>
    %58 = vector.extract_strided_slice %20 {offsets = [0, 0], sizes = [8, 16], strides = [1, 1]} : vector<8x128xf32> to vector<8x16xf32>
    %59 = vector.extract_strided_slice %27 {offsets = [0, 0], sizes = [8, 16], strides = [1, 1]} : vector<8x128xf32> to vector<8x16xf32>
    %cst_27 = arith.constant 0.000000e+00 : f32
    %60 = vector.broadcast %cst_27 : f32 to vector<8x48xf32>
    %61 = tpu.concatenate %56, %57, %58, %59, %60 in 1 : vector<8x32xf32>, vector<8x16xf32>, vector<8x16xf32>, vector<8x16xf32>, vector<8x48xf32> -> vector<8x128xf32>
    %c0_28 = arith.constant 0 : index
    %c0_29 = arith.constant 0 : index
    %62 = vector.load %arg2[%c0_28, %c0_29] : memref<8x128xf32, #tpu.memory_space<vmem>>, vector<8x128xf32>
    tpu.vector_store %arg2[%c0_28, %c0_29], %61 {strides = array<i32>} : memref<8x128xf32, #tpu.memory_space<vmem>>, vector<8x128xf32>,
    return
  }
}

</mosaic_0001>

<llo_original>
// kernel: tpu_custom_call.1
$region0: #{tpu_custom_call.1}
  #allocation0 [shape = 'u32[]', space=smem, size = 0x4, offset = 0x4, fixed_abs, tag = 'smem constant byte address 0x4 - core index']
  #allocation1 [shape = 'u32[144,128]{1,0:T(1,128)}', space=vmem, size = 0x12000, scoped, tag = 'internal scratch']
  %s0 = inlined_call_operand.hbm [shape: f32[8,128], index: 0, kind: input, shape index: {}]
  %s1 = inlined_call_operand.hbm [shape: f32[776,128], index: 1, kind: input, shape index: {}]
  %s2 = inlined_call_operand.hbm [shape: f32[8,128], index: 2, kind: output, shape index: {}]
  %s3 = sld [smem:[#allocation0]]
  $region26: #{tpu_custom_call.1} parent=0
    _
  %s5 = ssub.s32 1, %s3
  %s6 = scalar_select 0, %s5, %s3
  $region1: #{tpu_custom_call.1} parent=0
    #allocation2 [shape = 'u8[4096]{0}', space=vmem, size = 0x1000, scoped, tag = 'input window, operand 0, single buffered']
    #allocation3 [shape = 's32[1]{0}', space=sflag, size = 0x4, scoped, tag = 'scoped memory for tpu_custom_call.1']
    #allocation4 [shape = 's32[1]{0}', space=sflag, size = 0x4, scoped, tag = 'scoped memory for tpu_custom_call.1']
    #allocation5 [shape = 'u8[397312]{0}', space=vmem, size = 0x61000, scoped, tag = 'input window, operand 1, single buffered']
    #allocation6 [shape = 's32[1]{0}', space=sflag, size = 0x4, scoped, tag = 'scoped memory for tpu_custom_call.1']
    #allocation7 [shape = 'u8[4096]{0}', space=vmem, size = 0x1000, scoped, tag = 'output window, operand 0, single buffered']
    %7 = vsyncpa [#allocation3], 0
    %8 = vsyncpa [#allocation6], 0
    %9 = vsyncpa [#allocation4], 0
    // Predicated region
    $region2: #{tpu_custom_call.1} parent=1 // pred_check
      _
    $region3: #{tpu_custom_call.1} parent=1 // pred_check_branch
      %11 = sbr.rel (0) target = $region5
    $region4: #{tpu_custom_call.1} parent=1 // pred_region
      %s13 = ssub.s32 128, 128
      %14 = vsyncadd [#allocation3], %s13
      %s16 = sshll.u32 [#allocation2], 4
      %s17 = int_to_ptr.vmem [resolvable:$true] %s16
      %19 = dma.hbm_to_vmem [thread:$0]  %s0, 128, %s17, [#allocation3]
    $region5: #{tpu_custom_call.1} parent=1 // pred_fallthru
      _
    // Predicated region
    $region6: #{tpu_custom_call.1} parent=1 // pred_check
      _
    $region7: #{tpu_custom_call.1} parent=1 // pred_check_branch
      %21 = sbr.rel (0) target = $region9
    $region8: #{tpu_custom_call.1} parent=1 // pred_region
      %s23 = ssub.s32 12416, 12416
      %24 = vsyncadd [#allocation6], %s23
      %s25 = sshll.u32 [#allocation5], 4
      %s26 = int_to_ptr.vmem [resolvable:$true] %s25
      %31 = dma.hbm_to_vmem [thread:$0]  %s1, 12416, %s26, [#allocation6], 128, 128, 8
    $region9: #{tpu_custom_call.1} parent=1 // pred_fallthru
      _
    // Predicated region
    $region10: #{tpu_custom_call.1} parent=1 // pred_check
      _
    $region11: #{tpu_custom_call.1} parent=1 // pred_check_branch
      %33 = sbr.rel (0) target = $region13
    $region12: #{tpu_custom_call.1} parent=1 // pred_region
      %34 = dma.done [#allocation3], 128
    $region13: #{tpu_custom_call.1} parent=1 // pred_fallthru
      _
    // Predicated region
    $region14: #{tpu_custom_call.1} parent=1 // pred_check
      _
    $region15: #{tpu_custom_call.1} parent=1 // pred_check_branch
      %36 = sbr.rel (0) target = $region17
    $region16: #{tpu_custom_call.1} parent=1 // pred_region
      %37 = dma.done [#allocation6], 12416
    $region17: #{tpu_custom_call.1} parent=1 // pred_fallthru
      _
    %v38 = vld [vmem:[#allocation2] sm:$0xff]
    %v39 = vld [vmem:[#allocation5] sm:$0xff]
    %v40 = vld [vmem:[#allocation5 + $0x8] sm:$0xff]
    %v41 = vld [vmem:[#allocation5 + $0x10] sm:$0xff]
    %v42 = vld [vmem:[#allocation5 + $0x18] sm:$0xff]
    %v43 = vld [vmem:[#allocation5 + $0x20] sm:$0xff]
    %v44 = vld [vmem:[#allocation5 + $0x28] sm:$0xff]
    %v45 = vld [vmem:[#allocation5 + $0x30] sm:$0xff]
    %v46 = vld [vmem:[#allocation5 + $0x38] sm:$0xff]
    %v47 = vld [vmem:[#allocation5 + $0x40] sm:$0xff]
    %v48 = vld [vmem:[#allocation5 + $0x48] sm:$0xff]
    %v49 = vld [vmem:[#allocation5 + $0x50] sm:$0xff]
    %v50 = vld [vmem:[#allocation5 + $0x58] sm:$0xff]
    %v51 = vld [vmem:[#allocation5 + $0x60] sm:$0xff]
    %v52 = vld [vmem:[#allocation5 + $0x68] sm:$0xff]
    %v53 = vld [vmem:[#allocation5 + $0x70] sm:$0xff]
    %v54 = vld [vmem:[#allocation5 + $0x78] sm:$0xff]
    %v55 = vld [vmem:[#allocation5 + $0x300] sm:$0x1]
    %v56 = vlaneseq
    %v57 = vshrl.u32 %v56, 7
    %v58 = vsub.s32 0, %v57
    %v59 = vrot.slane %v55, %v58
    %60 = vmatprep.subr.mxu0 0.0
    %61 = vmatpush1.msra.mxu0 %v39
    %62 = vmatprep.subr.mxu0 0.0
    %63 = vmatpush1.msra.mxu0 %v40
    %64 = vmatprep.subr.mxu0 0.0
    %65 = vmatpush1.msra.mxu0 %v41
    %66 = vmatprep.subr.mxu0 0.0
    %67 = vmatpush1.msra.mxu0 %v42
    %68 = vmatprep.subr.mxu0 0.0
    %69 = vmatpush1.msra.mxu0 %v43
    %70 = vmatprep.subr.mxu0 0.0
    %71 = vmatpush1.msra.mxu0 %v44
    %72 = vmatprep.subr.mxu0 0.0
    %73 = vmatpush1.msra.mxu0 %v45
    %74 = vmatprep.subr.mxu0 0.0
    %75 = vmatpush1.msra.mxu0 %v46
    %76 = vmatprep.subr.mxu0 0.0
    %77 = vmatpush1.msra.mxu0 %v47
    %78 = vmatprep.subr.mxu0 0.0
    %79 = vmatpush1.msra.mxu0 %v48
    %80 = vmatprep.subr.mxu0 0.0
    %81 = vmatpush1.msra.mxu0 %v49
    %82 = vmatprep.subr.mxu0 0.0
    %83 = vmatpush1.msra.mxu0 %v50
    %84 = vmatprep.subr.mxu0 0.0
    %85 = vmatpush1.msra.mxu0 %v51
    %86 = vmatprep.subr.mxu0 0.0
    %87 = vmatpush1.msra.mxu0 %v52
    %88 = vmatprep.subr.mxu0 0.0
    %89 = vmatpush1.msra.mxu0 %v53
    %90 = vmatprep.subr.mxu0 0.0
    %91 = vmatpush1.msra.mxu0 %v54
    %92 = vmatprep.subr.mxu0 0.0
    %93 = vmatpush1.msra.mxu0 0.0
    %94 = vmatprep.subr.mxu0 0.0
    %95 = vmatpush1.msra.mxu0 0.0
    %96 = vmatprep.subr.mxu0 0.0
    %97 = vmatpush1.msra.mxu0 0.0
    %98 = vmatprep.subr.mxu0 0.0
    %99 = vmatpush1.msra.mxu0 0.0
    %100 = vmatprep.subr.mxu0 0.0
    %101 = vmatpush1.msra.mxu0 0.0
    %102 = vmatprep.subr.mxu0 0.0
    %103 = vmatpush1.msra.mxu0 0.0
    %104 = vmatprep.subr.mxu0 0.0
    %105 = vmatpush1.msra.mxu0 0.0
    %106 = vmatprep.subr.mxu0 0.0
    %107 = vmatpush1.msra.mxu0 0.0
    %108 = vmatprep.subr.mxu0 0.0
    %109 = vmatpush1.msra.mxu0 0.0
    %110 = vmatprep.subr.mxu0 0.0
    %111 = vmatpush1.msra.mxu0 0.0
    %112 = vmatprep.subr.mxu0 0.0
    %113 = vmatpush1.msra.mxu0 0.0
    %114 = vmatprep.subr.mxu0 0.0
    %115 = vmatpush1.msra.mxu0 0.0
    %116 = vmatprep.subr.mxu0 0.0
    %117 = vmatpush1.msra.mxu0 0.0
    %118 = vmatprep.subr.mxu0 0.0
    %119 = vmatpush1.msra.mxu0 0.0
    %120 = vmatprep.subr.mxu0 0.0
    %121 = vmatpush1.msra.mxu0 0.0
    %122 = vmatprep.subr.mxu0 0.0
    %123 = vmatpush1.msra.mxu0 0.0
    %124 = vmatprep.mubr.f32.mxu0 0.0
    %125 = vmatmul.mubr.f32.gmra.mrb[0].mxu0 %v38
    %v126 = vpop.f32.mrb[0].mxu0
    %v127 = vadd.f32 %v59, %v126
    %v128 = vpop.f32.mrb[0].mxu0
    %129 = vdwg.mxu0
    %v130 = vmax.f32 %v127, 0.0
    %v131 = vld [vmem:[#allocation5 + $0x80] sm:$0xff]
    %v132 = vld [vmem:[#allocation5 + $0x88] sm:$0xff]
    %v133 = vld [vmem:[#allocation5 + $0x90] sm:$0xff]
    %v134 = vld [vmem:[#allocation5 + $0x98] sm:$0xff]
    %v135 = vld [vmem:[#allocation5 + $0xa0] sm:$0xff]
    %v136 = vld [vmem:[#allocation5 + $0xa8] sm:$0xff]
    %v137 = vld [vmem:[#allocation5 + $0xb0] sm:$0xff]
    %v138 = vld [vmem:[#allocation5 + $0xb8] sm:$0xff]
    %v139 = vld [vmem:[#allocation5 + $0xc0] sm:$0xff]
    %v140 = vld [vmem:[#allocation5 + $0xc8] sm:$0xff]
    %v141 = vld [vmem:[#allocation5 + $0xd0] sm:$0xff]
    %v142 = vld [vmem:[#allocation5 + $0xd8] sm:$0xff]
    %v143 = vld [vmem:[#allocation5 + $0xe0] sm:$0xff]
    %v144 = vld [vmem:[#allocation5 + $0xe8] sm:$0xff]
    %v145 = vld [vmem:[#allocation5 + $0xf0] sm:$0xff]
    %v146 = vld [vmem:[#allocation5 + $0xf8] sm:$0xff]
    %v147 = vld [vmem:[#allocation5 + $0x301] sm:$0x1]
    %v148 = vlaneseq
    %v149 = vshrl.u32 %v148, 7
    %v150 = vsub.s32 0, %v149
    %v151 = vrot.slane %v147, %v150
    %152 = vmatprep.subr.mxu0 0.0
    %153 = vmatpush1.msra.mxu0 %v131
    %154 = vmatprep.subr.mxu0 0.0
    %155 = vmatpush1.msra.mxu0 %v132
    %156 = vmatprep.subr.mxu0 0.0
    %157 = vmatpush1.msra.mxu0 %v133
    %158 = vmatprep.subr.mxu0 0.0
    %159 = vmatpush1.msra.mxu0 %v134
    %160 = vmatprep.subr.mxu0 0.0
    %161 = vmatpush1.msra.mxu0 %v135
    %162 = vmatprep.subr.mxu0 0.0
    %163 = vmatpush1.msra.mxu0 %v136
    %164 = vmatprep.subr.mxu0 0.0
    %165 = vmatpush1.msra.mxu0 %v137
    %166 = vmatprep.subr.mxu0 0.0
    %167 = vmatpush1.msra.mxu0 %v138
    %168 = vmatprep.subr.mxu0 0.0
    %169 = vmatpush1.msra.mxu0 %v139
    %170 = vmatprep.subr.mxu0 0.0
    %171 = vmatpush1.msra.mxu0 %v140
    %172 = vmatprep.subr.mxu0 0.0
    %173 = vmatpush1.msra.mxu0 %v141
    %174 = vmatprep.subr.mxu0 0.0
    %175 = vmatpush1.msra.mxu0 %v142
    %176 = vmatprep.subr.mxu0 0.0
    %177 = vmatpush1.msra.mxu0 %v143
    %178 = vmatprep.subr.mxu0 0.0
    %179 = vmatpush1.msra.mxu0 %v144
    %180 = vmatprep.subr.mxu0 0.0
    %181 = vmatpush1.msra.mxu0 %v145
    %182 = vmatprep.subr.mxu0 0.0
    %183 = vmatpush1.msra.mxu0 %v146
    %184 = vmatprep.subr.mxu0 0.0
    %185 = vmatpush1.msra.mxu0 0.0
    %186 = vmatprep.subr.mxu0 0.0
    %187 = vmatpush1.msra.mxu0 0.0
    %188 = vmatprep.subr.mxu0 0.0
    %189 = vmatpush1.msra.mxu0 0.0
    %190 = vmatprep.subr.mxu0 0.0
    %191 = vmatpush1.msra.mxu0 0.0
    %192 = vmatprep.subr.mxu0 0.0
    %193 = vmatpush1.msra.mxu0 0.0
    %194 = vmatprep.subr.mxu0 0.0
    %195 = vmatpush1.msra.mxu0 0.0
    %196 = vmatprep.subr.mxu0 0.0
    %197 = vmatpush1.msra.mxu0 0.0
    %198 = vmatprep.subr.mxu0 0.0
    %199 = vmatpush1.msra.mxu0 0.0
    %200 = vmatprep.subr.mxu0 0.0
    %201 = vmatpush1.msra.mxu0 0.0
    %202 = vmatprep.subr.mxu0 0.0
    %203 = vmatpush1.msra.mxu0 0.0
    %204 = vmatprep.subr.mxu0 0.0
    %205 = vmatpush1.msra.mxu0 0.0
    %206 = vmatprep.subr.mxu0 0.0
    %207 = vmatpush1.msra.mxu0 0.0
    %208 = vmatprep.subr.mxu0 0.0
    %209 = vmatpush1.msra.mxu0 0.0
    %210 = vmatprep.subr.mxu0 0.0
    %211 = vmatpush1.msra.mxu0 0.0
    %212 = vmatprep.subr.mxu0 0.0
    %213 = vmatpush1.msra.mxu0 0.0
    %214 = vmatprep.subr.mxu0 0.0
    %215 = vmatpush1.msra.mxu0 0.0
    %216 = vmatprep.mubr.f32.mxu0 0.0
    %217 = vmatmul.mubr.f32.gmra.mrb[0].mxu0 %v130
    %v218 = vpop.f32.mrb[0].mxu0
    %v219 = vadd.f32 %v151, %v218
    %v220 = vpop.f32.mrb[0].mxu0
    %221 = vdwg.mxu0
    %v222 = vmax.f32 %v219, 0.0
    %v223 = vld [vmem:[#allocation5 + $0x100] sm:$0xff]
    %v224 = vld [vmem:[#allocation5 + $0x108] sm:$0xff]
    %v225 = vld [vmem:[#allocation5 + $0x110] sm:$0xff]
    %v226 = vld [vmem:[#allocation5 + $0x118] sm:$0xff]
    %v227 = vld [vmem:[#allocation5 + $0x120] sm:$0xff]
    %v228 = vld [vmem:[#allocation5 + $0x128] sm:$0xff]
    %v229 = vld [vmem:[#allocation5 + $0x130] sm:$0xff]
    %v230 = vld [vmem:[#allocation5 + $0x138] sm:$0xff]
    %v231 = vld [vmem:[#allocation5 + $0x140] sm:$0xff]
    %v232 = vld [vmem:[#allocation5 + $0x148] sm:$0xff]
    %v233 = vld [vmem:[#allocation5 + $0x150] sm:$0xff]
    %v234 = vld [vmem:[#allocation5 + $0x158] sm:$0xff]
    %v235 = vld [vmem:[#allocation5 + $0x160] sm:$0xff]
    %v236 = vld [vmem:[#allocation5 + $0x168] sm:$0xff]
    %v237 = vld [vmem:[#allocation5 + $0x170] sm:$0xff]
    %v238 = vld [vmem:[#allocation5 + $0x178] sm:$0xff]
    %v239 = vld [vmem:[#allocation5 + $0x302] sm:$0x1]
    %v240 = vlaneseq
    %v241 = vshrl.u32 %v240, 7
    %v242 = vsub.s32 0, %v241
    %v243 = vrot.slane %v239, %v242
    %244 = vmatprep.subr.mxu0 0.0
    %245 = vmatpush1.msra.mxu0 %v223
    %246 = vmatprep.subr.mxu0 0.0
    %247 = vmatpush1.msra.mxu0 %v224
    %248 = vmatprep.subr.mxu0 0.0
    %249 = vmatpush1.msra.mxu0 %v225
    %250 = vmatprep.subr.mxu0 0.0
    %251 = vmatpush1.msra.mxu0 %v226
    %252 = vmatprep.subr.mxu0 0.0
    %253 = vmatpush1.msra.mxu0 %v227
    %254 = vmatprep.subr.mxu0 0.0
    %255 = vmatpush1.msra.mxu0 %v228
    %256 = vmatprep.subr.mxu0 0.0
    %257 = vmatpush1.msra.mxu0 %v229
    %258 = vmatprep.subr.mxu0 0.0
    %259 = vmatpush1.msra.mxu0 %v230
    %260 = vmatprep.subr.mxu0 0.0
    %261 = vmatpush1.msra.mxu0 %v231
    %262 = vmatprep.subr.mxu0 0.0
    %263 = vmatpush1.msra.mxu0 %v232
    %264 = vmatprep.subr.mxu0 0.0
    %265 = vmatpush1.msra.mxu0 %v233
    %266 = vmatprep.subr.mxu0 0.0
    %267 = vmatpush1.msra.mxu0 %v234
    %268 = vmatprep.subr.mxu0 0.0
    %269 = vmatpush1.msra.mxu0 %v235
    %270 = vmatprep.subr.mxu0 0.0
    %271 = vmatpush1.msra.mxu0 %v236
    %272 = vmatprep.subr.mxu0 0.0
    %273 = vmatpush1.msra.mxu0 %v237
    %274 = vmatprep.subr.mxu0 0.0
    %275 = vmatpush1.msra.mxu0 %v238
    %276 = vmatprep.subr.mxu0 0.0
    %277 = vmatpush1.msra.mxu0 0.0
    %278 = vmatprep.subr.mxu0 0.0
    %279 = vmatpush1.msra.mxu0 0.0
    %280 = vmatprep.subr.mxu0 0.0
    %281 = vmatpush1.msra.mxu0 0.0
    %282 = vmatprep.subr.mxu0 0.0
    %283 = vmatpush1.msra.mxu0 0.0
    %284 = vmatprep.subr.mxu0 0.0
    %285 = vmatpush1.msra.mxu0 0.0
    %286 = vmatprep.subr.mxu0 0.0
    %287 = vmatpush1.msra.mxu0 0.0
    %288 = vmatprep.subr.mxu0 0.0
    %289 = vmatpush1.msra.mxu0 0.0
    %290 = vmatprep.subr.mxu0 0.0
    %291 = vmatpush1.msra.mxu0 0.0
    %292 = vmatprep.subr.mxu0 0.0
    %293 = vmatpush1.msra.mxu0 0.0
    %294 = vmatprep.subr.mxu0 0.0
    %295 = vmatpush1.msra.mxu0 0.0
    %296 = vmatprep.subr.mxu0 0.0
    %297 = vmatpush1.msra.mxu0 0.0
    %298 = vmatprep.subr.mxu0 0.0
    %299 = vmatpush1.msra.mxu0 0.0
    %300 = vmatprep.subr.mxu0 0.0
    %301 = vmatpush1.msra.mxu0 0.0
    %302 = vmatprep.subr.mxu0 0.0
    %303 = vmatpush1.msra.mxu0 0.0
    %304 = vmatprep.subr.mxu0 0.0
    %305 = vmatpush1.msra.mxu0 0.0
    %306 = vmatprep.subr.mxu0 0.0
    %307 = vmatpush1.msra.mxu0 0.0
    %308 = vmatprep.mubr.f32.mxu0 0.0
    %309 = vmatmul.mubr.f32.gmra.mrb[0].mxu0 %v222
    %v310 = vpop.f32.mrb[0].mxu0
    %v311 = vadd.f32 %v243, %v310
    %v312 = vpop.f32.mrb[0].mxu0
    %313 = vdwg.mxu0
    %314 = vrot.lane.b32.xlu0 %v311, 64
    %v315 = vpop.permute.xlu0 %314
    %316 = vrot.lane.b32.xlu0 %v38, 64
    %v317 = vpop.permute.xlu0 %316
    %v318 = vmul.f32 %v315, 1.442695
    %v319 = vpow.pop %v318
    %v320 = vmax.f32 %v319, 1e-10
    %v321 = vrsqrt.pop %v320
    %v322 = vmul.f32 %v320, %v321
    %vm323 = vcmp.eq.f32.partialorder %v320, inf
    %v324 = vsel %vm323, %v320, %v322
    %vm325 = vcmp.eq.f32.partialorder %v320, 0.0
    %v326 = vand.u32 %v320, 2147483648
    %v327 = vsel %vm325, %v326, %v324
    %v328 = vmul.f32 %v317, %v327
    %v329 = vadd.f32 %v311, %v328
    %v330 = vld [vmem:[#allocation5 + $0x180] sm:$0xff]
    %v331 = vld [vmem:[#allocation5 + $0x188] sm:$0xff]
    %v332 = vld [vmem:[#allocation5 + $0x190] sm:$0xff]
    %v333 = vld [vmem:[#allocation5 + $0x198] sm:$0xff]
    %v334 = vld [vmem:[#allocation5 + $0x1a0] sm:$0xff]
    %v335 = vld [vmem:[#allocation5 + $0x1a8] sm:$0xff]
    %v336 = vld [vmem:[#allocation5 + $0x1b0] sm:$0xff]
    %v337 = vld [vmem:[#allocation5 + $0x1b8] sm:$0xff]
    %v338 = vld [vmem:[#allocation5 + $0x1c0] sm:$0xff]
    %v339 = vld [vmem:[#allocation5 + $0x1c8] sm:$0xff]
    %v340 = vld [vmem:[#allocation5 + $0x1d0] sm:$0xff]
    %v341 = vld [vmem:[#allocation5 + $0x1d8] sm:$0xff]
    %v342 = vld [vmem:[#allocation5 + $0x1e0] sm:$0xff]
    %v343 = vld [vmem:[#allocation5 + $0x1e8] sm:$0xff]
    %v344 = vld [vmem:[#allocation5 + $0x1f0] sm:$0xff]
    %v345 = vld [vmem:[#allocation5 + $0x1f8] sm:$0xff]
    %v346 = vld [vmem:[#allocation5 + $0x303] sm:$0x1]
    %v347 = vlaneseq
    %v348 = vshrl.u32 %v347, 7
    %v349 = vsub.s32 0, %v348
    %v350 = vrot.slane %v346, %v349
    %351 = vmatprep.subr.mxu0 0.0
    %352 = vmatpush1.msra.mxu0 %v330
    %353 = vmatprep.subr.mxu0 0.0
    %354 = vmatpush1.msra.mxu0 %v331
    %355 = vmatprep.subr.mxu0 0.0
    %356 = vmatpush1.msra.mxu0 %v332
    %357 = vmatprep.subr.mxu0 0.0
    %358 = vmatpush1.msra.mxu0 %v333
    %359 = vmatprep.subr.mxu0 0.0
    %360 = vmatpush1.msra.mxu0 %v334
    %361 = vmatprep.subr.mxu0 0.0
    %362 = vmatpush1.msra.mxu0 %v335
    %363 = vmatprep.subr.mxu0 0.0
    %364 = vmatpush1.msra.mxu0 %v336
    %365 = vmatprep.subr.mxu0 0.0
    %366 = vmatpush1.msra.mxu0 %v337
    %367 = vmatprep.subr.mxu0 0.0
    %368 = vmatpush1.msra.mxu0 %v338
    %369 = vmatprep.subr.mxu0 0.0
    %370 = vmatpush1.msra.mxu0 %v339
    %371 = vmatprep.subr.mxu0 0.0
    %372 = vmatpush1.msra.mxu0 %v340
    %373 = vmatprep.subr.mxu0 0.0
    %374 = vmatpush1.msra.mxu0 %v341
    %375 = vmatprep.subr.mxu0 0.0
    %376 = vmatpush1.msra.mxu0 %v342
    %377 = vmatprep.subr.mxu0 0.0
    %378 = vmatpush1.msra.mxu0 %v343
    %379 = vmatprep.subr.mxu0 0.0
    %380 = vmatpush1.msra.mxu0 %v344
    %381 = vmatprep.subr.mxu0 0.0
    %382 = vmatpush1.msra.mxu0 %v345
    %383 = vmatprep.subr.mxu0 0.0
    %384 = vmatpush1.msra.mxu0 0.0
    %385 = vmatprep.subr.mxu0 0.0
    %386 = vmatpush1.msra.mxu0 0.0
    %387 = vmatprep.subr.mxu0 0.0
    %388 = vmatpush1.msra.mxu0 0.0
    %389 = vmatprep.subr.mxu0 0.0
    %390 = vmatpush1.msra.mxu0 0.0
    %391 = vmatprep.subr.mxu0 0.0
    %392 = vmatpush1.msra.mxu0 0.0
    %393 = vmatprep.subr.mxu0 0.0
    %394 = vmatpush1.msra.mxu0 0.0
    %395 = vmatprep.subr.mxu0 0.0
    %396 = vmatpush1.msra.mxu0 0.0
    %397 = vmatprep.subr.mxu0 0.0
    %398 = vmatpush1.msra.mxu0 0.0
    %399 = vmatprep.subr.mxu0 0.0
    %400 = vmatpush1.msra.mxu0 0.0
    %401 = vmatprep.subr.mxu0 0.0
    %402 = vmatpush1.msra.mxu0 0.0
    %403 = vmatprep.subr.mxu0 0.0
    %404 = vmatpush1.msra.mxu0 0.0
    %405 = vmatprep.subr.mxu0 0.0
    %406 = vmatpush1.msra.mxu0 0.0
    %407 = vmatprep.subr.mxu0 0.0
    %408 = vmatpush1.msra.mxu0 0.0
    %409 = vmatprep.subr.mxu0 0.0
    %410 = vmatpush1.msra.mxu0 0.0
    %411 = vmatprep.subr.mxu0 0.0
    %412 = vmatpush1.msra.mxu0 0.0
    %413 = vmatprep.subr.mxu0 0.0
    %414 = vmatpush1.msra.mxu0 0.0
    %415 = vmatprep.mubr.f32.mxu0 0.0
    %416 = vmatmul.mubr.f32.gmra.mrb[0].mxu0 %v329
    %v417 = vpop.f32.mrb[0].mxu0
    %v418 = vadd.f32 %v350, %v417
    %v419 = vpop.f32.mrb[0].mxu0
    %420 = vdwg.mxu0
    %v421 = vmax.f32 %v418, 0.0
    %v422 = vld [vmem:[#allocation5 + $0x200] sm:$0xff]
    %v423 = vld [vmem:[#allocation5 + $0x208] sm:$0xff]
    %v424 = vld [vmem:[#allocation5 + $0x210] sm:$0xff]
    %v425 = vld [vmem:[#allocation5 + $0x218] sm:$0xff]
    %v426 = vld [vmem:[#allocation5 + $0x220] sm:$0xff]
    %v427 = vld [vmem:[#allocation5 + $0x228] sm:$0xff]
    %v428 = vld [vmem:[#allocation5 + $0x230] sm:$0xff]
    %v429 = vld [vmem:[#allocation5 + $0x238] sm:$0xff]
    %v430 = vld [vmem:[#allocation5 + $0x240] sm:$0xff]
    %v431 = vld [vmem:[#allocation5 + $0x248] sm:$0xff]
    %v432 = vld [vmem:[#allocation5 + $0x250] sm:$0xff]
    %v433 = vld [vmem:[#allocation5 + $0x258] sm:$0xff]
    %v434 = vld [vmem:[#allocation5 + $0x260] sm:$0xff]
    %v435 = vld [vmem:[#allocation5 + $0x268] sm:$0xff]
    %v436 = vld [vmem:[#allocation5 + $0x270] sm:$0xff]
    %v437 = vld [vmem:[#allocation5 + $0x278] sm:$0xff]
    %v438 = vld [vmem:[#allocation5 + $0x304] sm:$0x1]
    %v439 = vlaneseq
    %v440 = vshrl.u32 %v439, 7
    %v441 = vsub.s32 0, %v440
    %v442 = vrot.slane %v438, %v441
    %443 = vmatprep.subr.mxu0 0.0
    %444 = vmatpush1.msra.mxu0 %v422
    %445 = vmatprep.subr.mxu0 0.0
    %446 = vmatpush1.msra.mxu0 %v423
    %447 = vmatprep.subr.mxu0 0.0
    %448 = vmatpush1.msra.mxu0 %v424
    %449 = vmatprep.subr.mxu0 0.0
    %450 = vmatpush1.msra.mxu0 %v425
    %451 = vmatprep.subr.mxu0 0.0
    %452 = vmatpush1.msra.mxu0 %v426
    %453 = vmatprep.subr.mxu0 0.0
    %454 = vmatpush1.msra.mxu0 %v427
    %455 = vmatprep.subr.mxu0 0.0
    %456 = vmatpush1.msra.mxu0 %v428
    %457 = vmatprep.subr.mxu0 0.0
    %458 = vmatpush1.msra.mxu0 %v429
    %459 = vmatprep.subr.mxu0 0.0
    %460 = vmatpush1.msra.mxu0 %v430
    %461 = vmatprep.subr.mxu0 0.0
    %462 = vmatpush1.msra.mxu0 %v431
    %463 = vmatprep.subr.mxu0 0.0
    %464 = vmatpush1.msra.mxu0 %v432
    %465 = vmatprep.subr.mxu0 0.0
    %466 = vmatpush1.msra.mxu0 %v433
    %467 = vmatprep.subr.mxu0 0.0
    %468 = vmatpush1.msra.mxu0 %v434
    %469 = vmatprep.subr.mxu0 0.0
    %470 = vmatpush1.msra.mxu0 %v435
    %471 = vmatprep.subr.mxu0 0.0
    %472 = vmatpush1.msra.mxu0 %v436
    %473 = vmatprep.subr.mxu0 0.0
    %474 = vmatpush1.msra.mxu0 %v437
    %475 = vmatprep.subr.mxu0 0.0
    %476 = vmatpush1.msra.mxu0 0.0
    %477 = vmatprep.subr.mxu0 0.0
    %478 = vmatpush1.msra.mxu0 0.0
    %479 = vmatprep.subr.mxu0 0.0
    %480 = vmatpush1.msra.mxu0 0.0
    %481 = vmatprep.subr.mxu0 0.0
    %482 = vmatpush1.msra.mxu0 0.0
    %483 = vmatprep.subr.mxu0 0.0
    %484 = vmatpush1.msra.mxu0 0.0
    %485 = vmatprep.subr.mxu0 0.0
    %486 = vmatpush1.msra.mxu0 0.0
    %487 = vmatprep.subr.mxu0 0.0
    %488 = vmatpush1.msra.mxu0 0.0
    %489 = vmatprep.subr.mxu0 0.0
    %490 = vmatpush1.msra.mxu0 0.0
    %491 = vmatprep.subr.mxu0 0.0
    %492 = vmatpush1.msra.mxu0 0.0
    %493 = vmatprep.subr.mxu0 0.0
    %494 = vmatpush1.msra.mxu0 0.0
    %495 = vmatprep.subr.mxu0 0.0
    %496 = vmatpush1.msra.mxu0 0.0
    %497 = vmatprep.subr.mxu0 0.0
    %498 = vmatpush1.msra.mxu0 0.0
    %499 = vmatprep.subr.mxu0 0.0
    %500 = vmatpush1.msra.mxu0 0.0
    %501 = vmatprep.subr.mxu0 0.0
    %502 = vmatpush1.msra.mxu0 0.0
    %503 = vmatprep.subr.mxu0 0.0
    %504 = vmatpush1.msra.mxu0 0.0
    %505 = vmatprep.subr.mxu0 0.0
    %506 = vmatpush1.msra.mxu0 0.0
    %507 = vmatprep.mubr.f32.mxu0 0.0
    %508 = vmatmul.mubr.f32.gmra.mrb[0].mxu0 %v421
    %v509 = vpop.f32.mrb[0].mxu0
    %v510 = vadd.f32 %v442, %v509
    %v511 = vpop.f32.mrb[0].mxu0
    %512 = vdwg.mxu0
    %v513 = vmax.f32 %v510, 0.0
    %v514 = vld [vmem:[#allocation5 + $0x280] sm:$0xff]
    %v515 = vld [vmem:[#allocation5 + $0x288] sm:$0xff]
    %v516 = vld [vmem:[#allocation5 + $0x290] sm:$0xff]
    %v517 = vld [vmem:[#allocation5 + $0x298] sm:$0xff]
    %v518 = vld [vmem:[#allocation5 + $0x2a0] sm:$0xff]
    %v519 = vld [vmem:[#allocation5 + $0x2a8] sm:$0xff]
    %v520 = vld [vmem:[#allocation5 + $0x2b0] sm:$0xff]
    %v521 = vld [vmem:[#allocation5 + $0x2b8] sm:$0xff]
    %v522 = vld [vmem:[#allocation5 + $0x2c0] sm:$0xff]
    %v523 = vld [vmem:[#allocation5 + $0x2c8] sm:$0xff]
    %v524 = vld [vmem:[#allocation5 + $0x2d0] sm:$0xff]
    %v525 = vld [vmem:[#allocation5 + $0x2d8] sm:$0xff]
    %v526 = vld [vmem:[#allocation5 + $0x2e0] sm:$0xff]
    %v527 = vld [vmem:[#allocation5 + $0x2e8] sm:$0xff]
    %v528 = vld [vmem:[#allocation5 + $0x2f0] sm:$0xff]
    %v529 = vld [vmem:[#allocation5 + $0x2f8] sm:$0xff]
    %v530 = vld [vmem:[#allocation5 + $0x305] sm:$0x1]
    %v531 = vlaneseq
    %v532 = vshrl.u32 %v531, 7
    %v533 = vsub.s32 0, %v532
    %v534 = vrot.slane %v530, %v533
    %535 = vmatprep.subr.mxu0 0.0
    %536 = vmatpush1.msra.mxu0 %v514
    %537 = vmatprep.subr.mxu0 0.0
    %538 = vmatpush1.msra.mxu0 %v515
    %539 = vmatprep.subr.mxu0 0.0
    %540 = vmatpush1.msra.mxu0 %v516
    %541 = vmatprep.subr.mxu0 0.0
    %542 = vmatpush1.msra.mxu0 %v517
    %543 = vmatprep.subr.mxu0 0.0
    %544 = vmatpush1.msra.mxu0 %v518
    %545 = vmatprep.subr.mxu0 0.0
    %546 = vmatpush1.msra.mxu0 %v519
    %547 = vmatprep.subr.mxu0 0.0
    %548 = vmatpush1.msra.mxu0 %v520
    %549 = vmatprep.subr.mxu0 0.0
    %550 = vmatpush1.msra.mxu0 %v521
    %551 = vmatprep.subr.mxu0 0.0
    %552 = vmatpush1.msra.mxu0 %v522
    %553 = vmatprep.subr.mxu0 0.0
    %554 = vmatpush1.msra.mxu0 %v523
    %555 = vmatprep.subr.mxu0 0.0
    %556 = vmatpush1.msra.mxu0 %v524
    %557 = vmatprep.subr.mxu0 0.0
    %558 = vmatpush1.msra.mxu0 %v525
    %559 = vmatprep.subr.mxu0 0.0
    %560 = vmatpush1.msra.mxu0 %v526
    %561 = vmatprep.subr.mxu0 0.0
    %562 = vmatpush1.msra.mxu0 %v527
    %563 = vmatprep.subr.mxu0 0.0
    %564 = vmatpush1.msra.mxu0 %v528
    %565 = vmatprep.subr.mxu0 0.0
    %566 = vmatpush1.msra.mxu0 %v529
    %567 = vmatprep.subr.mxu0 0.0
    %568 = vmatpush1.msra.mxu0 0.0
    %569 = vmatprep.subr.mxu0 0.0
    %570 = vmatpush1.msra.mxu0 0.0
    %571 = vmatprep.subr.mxu0 0.0
    %572 = vmatpush1.msra.mxu0 0.0
    %573 = vmatprep.subr.mxu0 0.0
    %574 = vmatpush1.msra.mxu0 0.0
    %575 = vmatprep.subr.mxu0 0.0
    %576 = vmatpush1.msra.mxu0 0.0
    %577 = vmatprep.subr.mxu0 0.0
    %578 = vmatpush1.msra.mxu0 0.0
    %579 = vmatprep.subr.mxu0 0.0
    %580 = vmatpush1.msra.mxu0 0.0
    %581 = vmatprep.subr.mxu0 0.0
    %582 = vmatpush1.msra.mxu0 0.0
    %583 = vmatprep.subr.mxu0 0.0
    %584 = vmatpush1.msra.mxu0 0.0
    %585 = vmatprep.subr.mxu0 0.0
    %586 = vmatpush1.msra.mxu0 0.0
    %587 = vmatprep.subr.mxu0 0.0
    %588 = vmatpush1.msra.mxu0 0.0
    %589 = vmatprep.subr.mxu0 0.0
    %590 = vmatpush1.msra.mxu0 0.0
    %591 = vmatprep.subr.mxu0 0.0
    %592 = vmatpush1.msra.mxu0 0.0
    %593 = vmatprep.subr.mxu0 0.0
    %594 = vmatpush1.msra.mxu0 0.0
    %595 = vmatprep.subr.mxu0 0.0
    %596 = vmatpush1.msra.mxu0 0.0
    %597 = vmatprep.subr.mxu0 0.0
    %598 = vmatpush1.msra.mxu0 0.0
    %599 = vmatprep.mubr.f32.mxu0 0.0
    %600 = vmatmul.mubr.f32.gmra.mrb[0].mxu0 %v513
    %v601 = vpop.f32.mrb[0].mxu0
    %v602 = vadd.f32 %v534, %v601
    %v603 = vpop.f32.mrb[0].mxu0
    %604 = vdwg.mxu0
    %v605 = vrot.slane %v602, 4
    %v606 = vmax.f32 %v602, %v605
    %v607 = vrot.slane %v606, 2
    %v608 = vmax.f32 %v606, %v607
    %v609 = vrot.slane %v608, 1
    %v610 = vmax.f32 %v608, %v609
    %v611 = vsub.f32 %v602, %v610
    %v612 = vmul.f32 %v611, 1.442695
    %v613 = vpow.pop %v612
    %v614 = vrot.slane %v613, 4
    %v615 = vadd.f32 %v613, %v614
    %v616 = vrot.slane %v615, 2
    %v617 = vadd.f32 %v615, %v616
    %v618 = vrot.slane %v617, 1
    %v619 = vadd.f32 %v617, %v618
    %v620 = vrcp.pop %v619
    %v621 = vmul.f32 %v613, %v620
    %623 = vrot.lane.b32.xlu0 %v311, 32
    %v624 = vpop.permute.xlu0 %623
    %627 = vrot.lane.b32.xlu0 %v315, 48
    %v628 = vpop.permute.xlu0 %627
    %631 = vrot.lane.b32.xlu0 %v329, 64
    %v632 = vpop.permute.xlu0 %631
    %vm634 = vcmask 261120
    %v635 = vsel %vm634, %v621, %v624
    %vm636 = vcmask 392192
    %v637 = vsel %vm636, %v635, %v628
    %vm638 = vcmask 523264
    %v639 = vsel %vm638, %v637, %v632
    %vm640 = vcmask 654336
    %v641 = vsel %vm640, %v639, 0.0
    %642 = vst [vmem:[#allocation7] sm:$0xff] %v641
    // Predicated region
    $region18: #{tpu_custom_call.1} parent=1 // pred_check
      _
    $region19: #{tpu_custom_call.1} parent=1 // pred_check_branch
      %644 = sbr.rel (0) target = $region21
    $region20: #{tpu_custom_call.1} parent=1 // pred_region
      %s646 = ssub.s32 128, 128
      %647 = vsyncadd [#allocation4], %s646
      %s649 = sshll.u32 [#allocation7], 4
      %s650 = int_to_ptr.vmem [resolvable:$true] %s649
      %652 = dma.vmem_to_hbm [thread:$0]  %s650, 128, %s2, [#allocation4]
    $region21: #{tpu_custom_call.1} parent=1 // pred_fallthru
      _
    // Predicated region
    $region22: #{tpu_custom_call.1} parent=1 // pred_check
      _
    $region23: #{tpu_custom_call.1} parent=1 // pred_check_branch
      %654 = sbr.rel (0) target = $region25
    $region24: #{tpu_custom_call.1} parent=1 // pred_region
      %655 = dma.done [#allocation4], 128
    $region25: #{tpu_custom_call.1} parent=1 // pred_fallthru
      _
    %656 = vsyncpa [#allocation3], 1
    %657 = vsyncpa [#allocation6], 1
    %658 = vsyncpa [#allocation4], 1

</llo_original>
